<compile_context>
chip_gen: v7x
topology: tpu7x:2x2x1
jax: 0.10.0
libtpu: 0.0.40
codegen_flags: <defaults>
</compile_context>

<pallas_src>
from functools import partial

import jax
import jax.numpy as jnp
import numpy as np
from jax.experimental import pallas as pl
from jax.experimental.pallas import tpu as pltpu


def _shortcut_kernel(x_ref, o_ref, *, pad, c_in, h_out, w_out):
    # x_ref: (B, C, H, W) VMEM tile.   o_ref: (B, C + 2*pad, H_out, W_out) tile.
    b = x_ref.shape[0]
    x = x_ref[...]  # full-tile load; stride-2 selection is done on the value.

    # Even-column (W / lane dim) selection: unit-stride slices + one lane concat.
    # (The lone cross-lane op in the kernel; XLU is otherwise idle — DMA-bound.)
    cols = [x[:, :, :, 2 * j:2 * j + 1] for j in range(w_out)]
    xw = cols[0] if w_out == 1 else jnp.concatenate(cols, axis=-1)  # (B, C, H, W_out)

    # Even-row (H / sublane dim) selection: one masked row store per output row,
    # written directly into the middle channel slab (data written exactly once).
    for i in range(h_out):
        o_ref[:, pad:pad + c_in, i:i + 1, :] = (
            xw[:, :, 2 * i:2 * i + 1, :].astype(o_ref.dtype))

    # Zero only the channel-pad slabs (no redundant full-tile zero fill).
    if pad > 0:
        zeros = jnp.zeros((b, pad, h_out, w_out), o_ref.dtype)
        o_ref[:, 0:pad, :, :] = zeros
        o_ref[:, pad + c_in:, :, :] = zeros


def _pick_batch_block(n, bytes_per_batch, vmem_budget=16 * 1024 * 1024):
    """Largest divisor of n whose double-buffered footprint fits the VMEM budget,
    preferring >= 2 grid steps so the (parallel) batch axis feeds both v7x TCs."""
    divisors = [d for d in range(1, n + 1) if n % d == 0]
    fits = [d for d in divisors if 2 * d * bytes_per_batch <= vmem_budget] or [1]
    multi = [d for d in fits if n // d >= 2]
    return max(multi) if multi else max(fits)


def lambda_layer_shortcut(x, pad):
    """Pallas equivalent of F.pad(x[:, :, ::2, ::2], (0,0,0,0,pad,pad))."""
    n, c, h, w = x.shape
    h_out, w_out = (h + 1) // 2, (w + 1) // 2   # matches PyTorch ::2 (ceil) for odd H/W
    c_out = c + 2 * pad
    itemsize = jnp.dtype(x.dtype).itemsize

    bytes_per_batch = (c * h * w + c_out * h_out * w_out) * itemsize
    bb = _pick_batch_block(n, bytes_per_batch)

    kernel = partial(_shortcut_kernel, pad=pad, c_in=c, h_out=h_out, w_out=w_out)

    read_bytes = n * c * h * w * itemsize
    write_bytes = n * c_out * h_out * w_out * itemsize

    # TODO(synk): skipping odd H rows at the DMA level and a fully lane-dense
    # flattened output both need a block second-minor dim of 1 (or in-kernel
    # value reshapes) that violate the (8,128) block rule / fragile-reshape
    # constraints at these CIFAR-sized W; kept full-row NCHW DMA instead.
    return pl.pallas_call(
        kernel,
        out_shape=jax.ShapeDtypeStruct((n, c_out, h_out, w_out), x.dtype),
        grid=(n // bb,),
        in_specs=[pl.BlockSpec((bb, c, h, w), lambda i: (i, 0, 0, 0))],
        out_specs=pl.BlockSpec((bb, c_out, h_out, w_out), lambda i: (i, 0, 0, 0)),
        compiler_params=pltpu.CompilerParams(dimension_semantics=("parallel",)),
        cost_estimate=pl.CostEstimate(
            flops=0, transcendentals=0,
            bytes_accessed=int(read_bytes + write_bytes)),
    )(x)


if __name__ == "__main__":
    # Shapes consistent with the CIFAR ResNet shortcut:
    # in_planes = 4, planes = 8 -> pad = planes // 4 = 2, C_out = 4 + 2*2 = 8.
    key = jax.random.PRNGKey(0)
    x = jax.random.normal(key, (2, 4, 16, 16), dtype=jnp.float32)
    pad = 2  # planes // 4

    out = lambda_layer_shortcut(x, pad)
    out = jax.block_until_ready(out)

    # Pure-JAX reference of the lambda's semantics.
    ref = jnp.pad(x[:, :, ::2, ::2], ((0, 0), (pad, pad), (0, 0), (0, 0)))
    assert out.shape == (2, 8, 8, 8)
    np.testing.assert_allclose(np.asarray(out), np.asarray(ref), rtol=0, atol=0)

    print("KERNEL_OK")
</pallas_src>

<mosaic_0001>
module attributes {stable_mosaic.version = 11 : i64} {
  func.func @_shortcut_kernel(%arg0: i32, %arg1: memref<1x4x16x16xf32, #tpu.memory_space<vmem>>, %arg2: memref<1x8x8x8xf32, #tpu.memory_space<vmem>>) attributes {dimension_semantics = [#tpu.dimension_semantics<parallel>], iteration_bounds = array<i64: 2>, scalar_prefetch = 0 : i64, scratch_operands = 0 : i64, tpu.core_type = #tpu.core_type<tc>, window_params = [{transform_indices = @transform_0, window_bounds = array<i64: 1, 4, 16, 16>}, {transform_indices = @transform_1, window_bounds = array<i64: 1, 8, 8, 8>}]} {
    %c0 = arith.constant 0 : index
    %c0_0 = arith.constant 0 : index
    %c0_1 = arith.constant 0 : index
    %c0_2 = arith.constant 0 : index
    %0 = vector.load %arg1[%c0, %c0_0, %c0_1, %c0_2] : memref<1x4x16x16xf32, #tpu.memory_space<vmem>>, vector<1x4x16x16xf32>
    %1 = vector.extract_strided_slice %0 {offsets = [0, 0, 0, 0], sizes = [1, 4, 16, 1], strides = [1, 1, 1, 1]} : vector<1x4x16x16xf32> to vector<1x4x16x1xf32>
    %2 = vector.extract_strided_slice %0 {offsets = [0, 0, 0, 2], sizes = [1, 4, 16, 1], strides = [1, 1, 1, 1]} : vector<1x4x16x16xf32> to vector<1x4x16x1xf32>
    %3 = vector.extract_strided_slice %0 {offsets = [0, 0, 0, 4], sizes = [1, 4, 16, 1], strides = [1, 1, 1, 1]} : vector<1x4x16x16xf32> to vector<1x4x16x1xf32>
    %4 = vector.extract_strided_slice %0 {offsets = [0, 0, 0, 6], sizes = [1, 4, 16, 1], strides = [1, 1, 1, 1]} : vector<1x4x16x16xf32> to vector<1x4x16x1xf32>
    %5 = vector.extract_strided_slice %0 {offsets = [0, 0, 0, 8], sizes = [1, 4, 16, 1], strides = [1, 1, 1, 1]} : vector<1x4x16x16xf32> to vector<1x4x16x1xf32>
    %6 = vector.extract_strided_slice %0 {offsets = [0, 0, 0, 10], sizes = [1, 4, 16, 1], strides = [1, 1, 1, 1]} : vector<1x4x16x16xf32> to vector<1x4x16x1xf32>
    %7 = vector.extract_strided_slice %0 {offsets = [0, 0, 0, 12], sizes = [1, 4, 16, 1], strides = [1, 1, 1, 1]} : vector<1x4x16x16xf32> to vector<1x4x16x1xf32>
    %8 = vector.extract_strided_slice %0 {offsets = [0, 0, 0, 14], sizes = [1, 4, 16, 1], strides = [1, 1, 1, 1]} : vector<1x4x16x16xf32> to vector<1x4x16x1xf32>
    %9 = tpu.concatenate %1, %2, %3, %4, %5, %6, %7, %8 in 3 : vector<1x4x16x1xf32>, vector<1x4x16x1xf32>, vector<1x4x16x1xf32>, vector<1x4x16x1xf32>, vector<1x4x16x1xf32>, vector<1x4x16x1xf32>, vector<1x4x16x1xf32>, vector<1x4x16x1xf32> -> vector<1x4x16x8xf32>
    %10 = vector.extract_strided_slice %9 {offsets = [0, 0, 0, 0], sizes = [1, 4, 1, 8], strides = [1, 1, 1, 1]} : vector<1x4x16x8xf32> to vector<1x4x1x8xf32>
    %c0_3 = arith.constant 0 : index
    %c2 = arith.constant 2 : index
    %c0_4 = arith.constant 0 : index
    %c0_5 = arith.constant 0 : index
    %11 = vector.load %arg2[%c0_3, %c2, %c0_4, %c0_5] : memref<1x8x8x8xf32, #tpu.memory_space<vmem>>, vector<1x4x1x8xf32>
    tpu.vector_store %arg2[%c0_3, %c2, %c0_4, %c0_5], %10 {strides = array<i32>} : memref<1x8x8x8xf32, #tpu.memory_space<vmem>>, vector<1x4x1x8xf32>,
    %12 = vector.extract_strided_slice %9 {offsets = [0, 0, 2, 0], sizes = [1, 4, 1, 8], strides = [1, 1, 1, 1]} : vector<1x4x16x8xf32> to vector<1x4x1x8xf32>
    %c0_6 = arith.constant 0 : index
    %c2_7 = arith.constant 2 : index
    %c1 = arith.constant 1 : index
    %c0_8 = arith.constant 0 : index
    %13 = vector.load %arg2[%c0_6, %c2_7, %c1, %c0_8] : memref<1x8x8x8xf32, #tpu.memory_space<vmem>>, vector<1x4x1x8xf32>
    tpu.vector_store %arg2[%c0_6, %c2_7, %c1, %c0_8], %12 {strides = array<i32>} : memref<1x8x8x8xf32, #tpu.memory_space<vmem>>, vector<1x4x1x8xf32>,
    %14 = vector.extract_strided_slice %9 {offsets = [0, 0, 4, 0], sizes = [1, 4, 1, 8], strides = [1, 1, 1, 1]} : vector<1x4x16x8xf32> to vector<1x4x1x8xf32>
    %c0_9 = arith.constant 0 : index
    %c2_10 = arith.constant 2 : index
    %c2_11 = arith.constant 2 : index
    %c0_12 = arith.constant 0 : index
    %15 = vector.load %arg2[%c0_9, %c2_10, %c2_11, %c0_12] : memref<1x8x8x8xf32, #tpu.memory_space<vmem>>, vector<1x4x1x8xf32>
    tpu.vector_store %arg2[%c0_9, %c2_10, %c2_11, %c0_12], %14 {strides = array<i32>} : memref<1x8x8x8xf32, #tpu.memory_space<vmem>>, vector<1x4x1x8xf32>,
    %16 = vector.extract_strided_slice %9 {offsets = [0, 0, 6, 0], sizes = [1, 4, 1, 8], strides = [1, 1, 1, 1]} : vector<1x4x16x8xf32> to vector<1x4x1x8xf32>
    %c0_13 = arith.constant 0 : index
    %c2_14 = arith.constant 2 : index
    %c3 = arith.constant 3 : index
    %c0_15 = arith.constant 0 : index
    %17 = vector.load %arg2[%c0_13, %c2_14, %c3, %c0_15] : memref<1x8x8x8xf32, #tpu.memory_space<vmem>>, vector<1x4x1x8xf32>
    tpu.vector_store %arg2[%c0_13, %c2_14, %c3, %c0_15], %16 {strides = array<i32>} : memref<1x8x8x8xf32, #tpu.memory_space<vmem>>, vector<1x4x1x8xf32>,
    %18 = vector.extract_strided_slice %9 {offsets = [0, 0, 8, 0], sizes = [1, 4, 1, 8], strides = [1, 1, 1, 1]} : vector<1x4x16x8xf32> to vector<1x4x1x8xf32>
    %c0_16 = arith.constant 0 : index
    %c2_17 = arith.constant 2 : index
    %c4 = arith.constant 4 : index
    %c0_18 = arith.constant 0 : index
    %19 = vector.load %arg2[%c0_16, %c2_17, %c4, %c0_18] : memref<1x8x8x8xf32, #tpu.memory_space<vmem>>, vector<1x4x1x8xf32>
    tpu.vector_store %arg2[%c0_16, %c2_17, %c4, %c0_18], %18 {strides = array<i32>} : memref<1x8x8x8xf32, #tpu.memory_space<vmem>>, vector<1x4x1x8xf32>,
    %20 = vector.extract_strided_slice %9 {offsets = [0, 0, 10, 0], sizes = [1, 4, 1, 8], strides = [1, 1, 1, 1]} : vector<1x4x16x8xf32> to vector<1x4x1x8xf32>
    %c0_19 = arith.constant 0 : index
    %c2_20 = arith.constant 2 : index
    %c5 = arith.constant 5 : index
    %c0_21 = arith.constant 0 : index
    %21 = vector.load %arg2[%c0_19, %c2_20, %c5, %c0_21] : memref<1x8x8x8xf32, #tpu.memory_space<vmem>>, vector<1x4x1x8xf32>
    tpu.vector_store %arg2[%c0_19, %c2_20, %c5, %c0_21], %20 {strides = array<i32>} : memref<1x8x8x8xf32, #tpu.memory_space<vmem>>, vector<1x4x1x8xf32>,
    %22 = vector.extract_strided_slice %9 {offsets = [0, 0, 12, 0], sizes = [1, 4, 1, 8], strides = [1, 1, 1, 1]} : vector<1x4x16x8xf32> to vector<1x4x1x8xf32>
    %c0_22 = arith.constant 0 : index
    %c2_23 = arith.constant 2 : index
    %c6 = arith.constant 6 : index
    %c0_24 = arith.constant 0 : index
    %23 = vector.load %arg2[%c0_22, %c2_23, %c6, %c0_24] : memref<1x8x8x8xf32, #tpu.memory_space<vmem>>, vector<1x4x1x8xf32>
    tpu.vector_store %arg2[%c0_22, %c2_23, %c6, %c0_24], %22 {strides = array<i32>} : memref<1x8x8x8xf32, #tpu.memory_space<vmem>>, vector<1x4x1x8xf32>,
    %24 = vector.extract_strided_slice %9 {offsets = [0, 0, 14, 0], sizes = [1, 4, 1, 8], strides = [1, 1, 1, 1]} : vector<1x4x16x8xf32> to vector<1x4x1x8xf32>
    %c0_25 = arith.constant 0 : index
    %c2_26 = arith.constant 2 : index
    %c7 = arith.constant 7 : index
    %c0_27 = arith.constant 0 : index
    %25 = vector.load %arg2[%c0_25, %c2_26, %c7, %c0_27] : memref<1x8x8x8xf32, #tpu.memory_space<vmem>>, vector<1x4x1x8xf32>
    tpu.vector_store %arg2[%c0_25, %c2_26, %c7, %c0_27], %24 {strides = array<i32>} : memref<1x8x8x8xf32, #tpu.memory_space<vmem>>, vector<1x4x1x8xf32>,
    %cst = arith.constant 0.000000e+00 : f32
    %26 = vector.broadcast %cst : f32 to vector<1x2x8x8xf32>
    %c0_28 = arith.constant 0 : index
    %c0_29 = arith.constant 0 : index
    %c0_30 = arith.constant 0 : index
    %c0_31 = arith.constant 0 : index
    %27 = vector.load %arg2[%c0_28, %c0_29, %c0_30, %c0_31] : memref<1x8x8x8xf32, #tpu.memory_space<vmem>>, vector<1x2x8x8xf32>
    tpu.vector_store %arg2[%c0_28, %c0_29, %c0_30, %c0_31], %26 {strides = array<i32>} : memref<1x8x8x8xf32, #tpu.memory_space<vmem>>, vector<1x2x8x8xf32>,
    %c0_32 = arith.constant 0 : index
    %c6_33 = arith.constant 6 : index
    %c0_34 = arith.constant 0 : index
    %c0_35 = arith.constant 0 : index
    %28 = vector.load %arg2[%c0_32, %c6_33, %c0_34, %c0_35] : memref<1x8x8x8xf32, #tpu.memory_space<vmem>>, vector<1x2x8x8xf32>
    tpu.vector_store %arg2[%c0_32, %c6_33, %c0_34, %c0_35], %26 {strides = array<i32>} : memref<1x8x8x8xf32, #tpu.memory_space<vmem>>, vector<1x2x8x8xf32>,
    return
  }
  func.func @transform_0(%arg0: i32) -> (i32, i32, i32, i32) {
    %c0_i32 = arith.constant 0 : i32
    %c0_i32_0 = arith.constant 0 : i32
    %c0_i32_1 = arith.constant 0 : i32
    %c0_i32_2 = arith.constant 0 : i32
    return %arg0, %c0_i32, %c0_i32_0, %c0_i32_1 : i32, i32, i32, i32
  }
  func.func @transform_1(%arg0: i32) -> (i32, i32, i32, i32) {
    %c0_i32 = arith.constant 0 : i32
    %c0_i32_0 = arith.constant 0 : i32
    %c0_i32_1 = arith.constant 0 : i32
    %c0_i32_2 = arith.constant 0 : i32
    return %arg0, %c0_i32, %c0_i32_0, %c0_i32_1 : i32, i32, i32, i32
  }
}

</mosaic_0001>

<llo_original>
// kernel: tpu_custom_call.1
$region0: #{tpu_custom_call.1}
  #allocation0 [shape = 'u32[]', space=smem, size = 0x4, offset = 0x4, fixed_abs, tag = 'smem constant byte address 0x4 - core index']
  #allocation1 [shape = 'u32[144,128]{1,0:T(1,128)}', space=vmem, size = 0x12000, scoped, tag = 'internal scratch']
  %s0 = inlined_call_operand.hbm [shape: f32[2,4,16,16], index: 0, kind: input, shape index: {}]
  %s1 = inlined_call_operand.hbm [shape: f32[2,8,8,8], index: 1, kind: output, shape index: {}]
  %s2 = sld [smem:[#allocation0]]
  $region41: #{tpu_custom_call.1} parent=0
    _
  %s4 = ssub.s32 1, %s2
  %s5 = scalar_select 0, %s4, %s2
  $region1: #{tpu_custom_call.1} parent=0
    #allocation2 [shape = 'u8[65536]{0}', space=vmem, size = 0x10000, scoped, tag = 'input window, operand 0']
    #allocation3 [shape = 's32[2]{0}', space=sflag, size = 0x8, scoped, tag = 'scoped memory for tpu_custom_call.1']
    #allocation4 [shape = 's32[2]{0}', space=sflag, size = 0x8, scoped, tag = 'scoped memory for tpu_custom_call.1']
    #allocation5 [shape = 'u8[65536]{0}', space=vmem, size = 0x10000, scoped, tag = 'output window, operand 0']
    %6 = vsyncpa [#allocation3], 0
    %s7 = scalar_lea.sflag [#allocation3], 1
    %8 = vsyncpa %s7, 0
    %9 = vsyncpa [#allocation4], 0
    %s10 = scalar_lea.sflag [#allocation4], 1
    %11 = vsyncpa %s10, 0
    loop: start=0, step=1, limit=4
    $region2: #{tpu_custom_call.1} parent=1 // loop_pre_header
      _
    $region3: #{tpu_custom_call.1} parent=1 // loop_header
      %s13 = sphi 0, %s17
      %p14 = scmp.ge.s32.totalorder %s13, 4
      %s23 = sphi 0, %s25
      %s26 = sphi 0, %s23
      %s27 = sphi 0, %s26
      %s43 = sphi 0, %s27
      %s49 = sphi 0, %s51
      %s52 = sphi 0, %s49
      %s53 = sphi 0, %s52
      %s69 = sphi 0, %s53
    $region4: #{tpu_custom_call.1} parent=1 // loop_header_branch
      %16 = sbr.rel (%p14) target = $region8
    $region5: #{tpu_custom_call.1} parent=1 // loop_body
      %s18 = ssub.s32 %s13, 1
      %s19 = ssub.s32 %s13, 2
      %s20 = sadd.s32 %s13, 1
      %s21 = ssub.s32 %s13, %s20
      %p22 = scmp.eq.s32.totalorder %s21, 0
      %s24 = sadd.s32 %s23, 1
      %s25 = scalar_select %p22, %s23, %s24
      %p28 = pneg %p22
      %p29 = scmp.eq.s32.totalorder %s13, 1
      %p30 = por %p28, %p29
      %p31 = scmp.ne.s32.totalorder %s23, %s26
      %p32 = scmp.eq.s32.totalorder %s13, 0
      %p33 = por %p31, %p32
      %p34 = scmp.ne.s32.totalorder %s23, %s26
      %p35 = scmp.eq.s32.totalorder %s18, 1
      %p36 = por %p34, %p35
      %p37 = scmp.ne.s32.totalorder %s26, %s27
      %p38 = scmp.eq.s32.totalorder %s18, 0
      %p39 = por %p37, %p38
      %p40 = scmp.ne.s32.totalorder %s26, %s27
      %p41 = scmp.eq.s32.totalorder %s19, 1
      %p42 = por %p40, %p41
      %p44 = scmp.ne.s32.totalorder %s27, %s43
      %p45 = scmp.eq.s32.totalorder %s19, 0
      %p46 = por %p44, %p45
      %s47 = ssub.s32 %s13, %s20
      %p48 = scmp.eq.s32.totalorder %s47, 0
      %s50 = sadd.s32 %s49, 1
      %s51 = scalar_select %p48, %s49, %s50
      %p54 = pneg %p48
      %p55 = scmp.eq.s32.totalorder %s13, 1
      %p56 = por %p54, %p55
      %p57 = scmp.ne.s32.totalorder %s49, %s52
      %p58 = scmp.eq.s32.totalorder %s13, 0
      %p59 = por %p57, %p58
      %p60 = scmp.ne.s32.totalorder %s49, %s52
      %p61 = scmp.eq.s32.totalorder %s18, 1
      %p62 = por %p60, %p61
      %p63 = scmp.ne.s32.totalorder %s52, %s53
      %p64 = scmp.eq.s32.totalorder %s18, 0
      %p65 = por %p63, %p64
      %p66 = scmp.ne.s32.totalorder %s52, %s53
      %p67 = scmp.eq.s32.totalorder %s19, 1
      %p68 = por %p66, %p67
      %p70 = scmp.ne.s32.totalorder %s53, %s69
      %p71 = scmp.eq.s32.totalorder %s19, 0
      %p72 = por %p70, %p71
      %p73 = scmp.le.s32.totalorder 1, %s13
      %p74 = scmp.lt.s32.totalorder %s13, 3
      %p75 = pnand %p73, %p74
      %p76 = pneg %p75
      // Predicated region
      $region9: #{tpu_custom_call.1} parent=5 // pred_check
        _
      $region10: #{tpu_custom_call.1} parent=5 // pred_check_branch
        %78 = sbr.rel (%p75) target = $region12
      $region11: #{tpu_custom_call.1} parent=5 // pred_region
        %s79 = ssub.s32 %s13, 1
      $region12: #{tpu_custom_call.1} parent=5 // pred_fallthru
        _
      %p80 = scmp.lt.s32.totalorder %s13, 2
      // Predicated region
      $region13: #{tpu_custom_call.1} parent=5 // pred_check
        %p81 = pneg %p80
      $region14: #{tpu_custom_call.1} parent=5 // pred_check_branch
        %83 = sbr.rel (%p81) target = $region16
      $region15: #{tpu_custom_call.1} parent=5 // pred_region
        // Predicated region
        $region17: #{tpu_custom_call.1} parent=15 // pred_check
          %p84 = pneg %p33
        $region18: #{tpu_custom_call.1} parent=15 // pred_check_branch
          %86 = sbr.rel (%p84) target = $region20
        $region19: #{tpu_custom_call.1} parent=15 // pred_region
          %s87 = sand.u32 %s23, 1
          %s88 = scalar_lea.sflag [#allocation3], %s87
          %s89 = sand.u32 %s23, 1
          %s90 = smul.addr %s89, 64
          %s91 = scalar_lea.vmem [#allocation2], %s90
          %s93 = ssub.s32 1024, 1024
          %94 = vsyncadd %s88, %s93
          %s95 = smul.addr %s13, 8
          %s96 = smul.addr %s95, 128
          %s97 = scalar_lea.hbm %s0, %s96
          %s98 = sshll.u32 %s91, 4
          %s99 = int_to_ptr.vmem [resolvable:$true] %s98
          %104 = dma.hbm_to_vmem [thread:$0]  %s97, 1024, %s99, %s88, 128, 128, 8
        $region20: #{tpu_custom_call.1} parent=15 // pred_fallthru
          _
      $region16: #{tpu_custom_call.1} parent=5 // pred_fallthru
        _
      %p105 = scmp.le.s32.totalorder 1, %s13
      %p106 = scmp.lt.s32.totalorder %s13, 3
      %p107 = pnand %p105, %p106
      %p108 = pneg %p107
      // Predicated region
      $region21: #{tpu_custom_call.1} parent=5 // pred_check
        _
      $region22: #{tpu_custom_call.1} parent=5 // pred_check_branch
        %110 = sbr.rel (%p107) target = $region24
      $region23: #{tpu_custom_call.1} parent=5 // pred_region
        %s111 = ssub.s32 %s13, 1
        %s112 = sand.u32 %s26, 1
        %s113 = scalar_lea.sflag [#allocation3], %s112
        %s114 = sand.u32 %s26, 1
        %s115 = smul.addr %s114, 64
        %s116 = scalar_lea.vmem [#allocation2], %s115
        // Predicated region
        $region25: #{tpu_custom_call.1} parent=23 // pred_check
          %p117 = pneg %p39
        $region26: #{tpu_custom_call.1} parent=23 // pred_check_branch
          %119 = sbr.rel (%p117) target = $region28
        $region27: #{tpu_custom_call.1} parent=23 // pred_region
          %120 = dma.done %s113, 1024
        $region28: #{tpu_custom_call.1} parent=23 // pred_fallthru
          _
        %s121 = sand.u32 %s26, 1
        %s122 = scalar_lea.sflag [#allocation3], %s121
        %s123 = sand.u32 %s26, 1
        %s124 = smul.addr %s123, 64
        %s125 = scalar_lea.vmem [#allocation2], %s124
        %p126 = pneg %p39
        %p127 = pneg %p36
        %p128 = pneg %p65
        %p129 = pneg %p62
        %s130 = sand.u32 %s52, 1
        %s131 = scalar_lea.sflag [#allocation4], %s130
        %s132 = sand.u32 %s52, 1
        %s133 = smul.addr %s132, 64
        %s134 = scalar_lea.vmem [#allocation5], %s133
        %v135 = vld [vmem:[%s116] sm:$0xff]
        %v136 = vld [vmem:[%s116 + $0x8] sm:$0xff]
        %v137 = vld [vmem:[%s116 + $0x10] sm:$0xff]
        %v138 = vld [vmem:[%s116 + $0x18] sm:$0xff]
        %v139 = vld [vmem:[%s116 + $0x20] sm:$0xff]
        %v140 = vld [vmem:[%s116 + $0x28] sm:$0xff]
        %v141 = vld [vmem:[%s116 + $0x30] sm:$0xff]
        %v142 = vld [vmem:[%s116 + $0x38] sm:$0xff]
        %151 = vrot.lane.b32.xlu0 %v135, 127
        %v152 = vpop.permute.xlu0 %151
        %153 = vrot.lane.b32.xlu0 %v136, 127
        %v154 = vpop.permute.xlu0 %153
        %155 = vrot.lane.b32.xlu0 %v137, 127
        %v156 = vpop.permute.xlu0 %155
        %157 = vrot.lane.b32.xlu0 %v138, 127
        %v158 = vpop.permute.xlu0 %157
        %159 = vrot.lane.b32.xlu0 %v139, 127
        %v160 = vpop.permute.xlu0 %159
        %161 = vrot.lane.b32.xlu0 %v140, 127
        %v162 = vpop.permute.xlu0 %161
        %163 = vrot.lane.b32.xlu0 %v141, 127
        %v164 = vpop.permute.xlu0 %163
        %165 = vrot.lane.b32.xlu0 %v142, 127
        %v166 = vpop.permute.xlu0 %165
        %175 = vrot.lane.b32.xlu0 %v135, 126
        %v176 = vpop.permute.xlu0 %175
        %177 = vrot.lane.b32.xlu0 %v136, 126
        %v178 = vpop.permute.xlu0 %177
        %179 = vrot.lane.b32.xlu0 %v137, 126
        %v180 = vpop.permute.xlu0 %179
        %181 = vrot.lane.b32.xlu0 %v138, 126
        %v182 = vpop.permute.xlu0 %181
        %183 = vrot.lane.b32.xlu0 %v139, 126
        %v184 = vpop.permute.xlu0 %183
        %185 = vrot.lane.b32.xlu0 %v140, 126
        %v186 = vpop.permute.xlu0 %185
        %187 = vrot.lane.b32.xlu0 %v141, 126
        %v188 = vpop.permute.xlu0 %187
        %189 = vrot.lane.b32.xlu0 %v142, 126
        %v190 = vpop.permute.xlu0 %189
        %199 = vrot.lane.b32.xlu0 %v135, 125
        %v200 = vpop.permute.xlu0 %199
        %201 = vrot.lane.b32.xlu0 %v136, 125
        %v202 = vpop.permute.xlu0 %201
        %203 = vrot.lane.b32.xlu0 %v137, 125
        %v204 = vpop.permute.xlu0 %203
        %205 = vrot.lane.b32.xlu0 %v138, 125
        %v206 = vpop.permute.xlu0 %205
        %207 = vrot.lane.b32.xlu0 %v139, 125
        %v208 = vpop.permute.xlu0 %207
        %209 = vrot.lane.b32.xlu0 %v140, 125
        %v210 = vpop.permute.xlu0 %209
        %211 = vrot.lane.b32.xlu0 %v141, 125
        %v212 = vpop.permute.xlu0 %211
        %213 = vrot.lane.b32.xlu0 %v142, 125
        %v214 = vpop.permute.xlu0 %213
        %223 = vrot.lane.b32.xlu0 %v135, 124
        %v224 = vpop.permute.xlu0 %223
        %225 = vrot.lane.b32.xlu0 %v136, 124
        %v226 = vpop.permute.xlu0 %225
        %227 = vrot.lane.b32.xlu0 %v137, 124
        %v228 = vpop.permute.xlu0 %227
        %229 = vrot.lane.b32.xlu0 %v138, 124
        %v230 = vpop.permute.xlu0 %229
        %231 = vrot.lane.b32.xlu0 %v139, 124
        %v232 = vpop.permute.xlu0 %231
        %233 = vrot.lane.b32.xlu0 %v140, 124
        %v234 = vpop.permute.xlu0 %233
        %235 = vrot.lane.b32.xlu0 %v141, 124
        %v236 = vpop.permute.xlu0 %235
        %237 = vrot.lane.b32.xlu0 %v142, 124
        %v238 = vpop.permute.xlu0 %237
        %247 = vrot.lane.b32.xlu0 %v135, 123
        %v248 = vpop.permute.xlu0 %247
        %249 = vrot.lane.b32.xlu0 %v136, 123
        %v250 = vpop.permute.xlu0 %249
        %251 = vrot.lane.b32.xlu0 %v137, 123
        %v252 = vpop.permute.xlu0 %251
        %253 = vrot.lane.b32.xlu0 %v138, 123
        %v254 = vpop.permute.xlu0 %253
        %255 = vrot.lane.b32.xlu0 %v139, 123
        %v256 = vpop.permute.xlu0 %255
        %257 = vrot.lane.b32.xlu0 %v140, 123
        %v258 = vpop.permute.xlu0 %257
        %259 = vrot.lane.b32.xlu0 %v141, 123
        %v260 = vpop.permute.xlu0 %259
        %261 = vrot.lane.b32.xlu0 %v142, 123
        %v262 = vpop.permute.xlu0 %261
        %271 = vrot.lane.b32.xlu0 %v135, 122
        %v272 = vpop.permute.xlu0 %271
        %273 = vrot.lane.b32.xlu0 %v136, 122
        %v274 = vpop.permute.xlu0 %273
        %275 = vrot.lane.b32.xlu0 %v137, 122
        %v276 = vpop.permute.xlu0 %275
        %277 = vrot.lane.b32.xlu0 %v138, 122
        %v278 = vpop.permute.xlu0 %277
        %279 = vrot.lane.b32.xlu0 %v139, 122
        %v280 = vpop.permute.xlu0 %279
        %281 = vrot.lane.b32.xlu0 %v140, 122
        %v282 = vpop.permute.xlu0 %281
        %283 = vrot.lane.b32.xlu0 %v141, 122
        %v284 = vpop.permute.xlu0 %283
        %285 = vrot.lane.b32.xlu0 %v142, 122
        %v286 = vpop.permute.xlu0 %285
        %295 = vrot.lane.b32.xlu0 %v135, 121
        %v296 = vpop.permute.xlu0 %295
        %297 = vrot.lane.b32.xlu0 %v136, 121
        %v298 = vpop.permute.xlu0 %297
        %299 = vrot.lane.b32.xlu0 %v137, 121
        %v300 = vpop.permute.xlu0 %299
        %301 = vrot.lane.b32.xlu0 %v138, 121
        %v302 = vpop.permute.xlu0 %301
        %303 = vrot.lane.b32.xlu0 %v139, 121
        %v304 = vpop.permute.xlu0 %303
        %305 = vrot.lane.b32.xlu0 %v140, 121
        %v306 = vpop.permute.xlu0 %305
        %307 = vrot.lane.b32.xlu0 %v141, 121
        %v308 = vpop.permute.xlu0 %307
        %309 = vrot.lane.b32.xlu0 %v142, 121
        %v310 = vpop.permute.xlu0 %309
        %vm319 = vcmask 7168
        %v320 = vsel %vm319, %v135, %v152
        %v321 = vsel %vm319, %v136, %v154
        %v322 = vsel %vm319, %v137, %v156
        %v323 = vsel %vm319, %v138, %v158
        %v324 = vsel %vm319, %v139, %v160
        %v325 = vsel %vm319, %v140, %v162
        %v326 = vsel %vm319, %v141, %v164
        %v327 = vsel %vm319, %v142, %v166
        %vm328 = vcmask 15360
        %v329 = vsel %vm328, %v320, %v176
        %v330 = vsel %vm328, %v321, %v178
        %v331 = vsel %vm328, %v322, %v180
        %v332 = vsel %vm328, %v323, %v182
        %v333 = vsel %vm328, %v324, %v184
        %v334 = vsel %vm328, %v325, %v186
        %v335 = vsel %vm328, %v326, %v188
        %v336 = vsel %vm328, %v327, %v190
        %vm337 = vcmask 23552
        %v338 = vsel %vm337, %v329, %v200
        %v339 = vsel %vm337, %v330, %v202
        %v340 = vsel %vm337, %v331, %v204
        %v341 = vsel %vm337, %v332, %v206
        %v342 = vsel %vm337, %v333, %v208
        %v343 = vsel %vm337, %v334, %v210
        %v344 = vsel %vm337, %v335, %v212
        %v345 = vsel %vm337, %v336, %v214
        %vm346 = vcmask 31744
        %v347 = vsel %vm346, %v338, %v224
        %v348 = vsel %vm346, %v339, %v226
        %v349 = vsel %vm346, %v340, %v228
        %v350 = vsel %vm346, %v341, %v230
        %v351 = vsel %vm346, %v342, %v232
        %v352 = vsel %vm346, %v343, %v234
        %v353 = vsel %vm346, %v344, %v236
        %v354 = vsel %vm346, %v345, %v238
        %vm355 = vcmask 39936
        %v356 = vsel %vm355, %v347, %v248
        %v357 = vsel %vm355, %v348, %v250
        %v358 = vsel %vm355, %v349, %v252
        %v359 = vsel %vm355, %v350, %v254
        %v360 = vsel %vm355, %v351, %v256
        %v361 = vsel %vm355, %v352, %v258
        %v362 = vsel %vm355, %v353, %v260
        %v363 = vsel %vm355, %v354, %v262
        %vm364 = vcmask 48128
        %v365 = vsel %vm364, %v356, %v272
        %v366 = vsel %vm364, %v357, %v274
        %v367 = vsel %vm364, %v358, %v276
        %v368 = vsel %vm364, %v359, %v278
        %v369 = vsel %vm364, %v360, %v280
        %v370 = vsel %vm364, %v361, %v282
        %v371 = vsel %vm364, %v362, %v284
        %v372 = vsel %vm364, %v363, %v286
        %vm373 = vcmask 56320
        %v374 = vsel %vm373, %v365, %v296
        %v375 = vsel %vm373, %v366, %v298
        %v376 = vsel %vm373, %v367, %v300
        %v377 = vsel %vm373, %v368, %v302
        %v378 = vsel %vm373, %v369, %v304
        %v379 = vsel %vm373, %v370, %v306
        %v380 = vsel %vm373, %v371, %v308
        %v381 = vsel %vm373, %v372, %v310
        %s382 = scalar_lea.vmem %s134, 16 [#allocation5]
        %vm383 = vcmask 57344
        %384 = vst.msk [vmem:[%s382] sm:$0x1] %vm383, %v374
        %385 = vst.msk [vmem:[%s382 + $0x8] sm:$0x1] %vm383, %v376
        %386 = vst.msk [vmem:[%s382 + $0x10] sm:$0x1] %vm383, %v378
        %387 = vst.msk [vmem:[%s382 + $0x18] sm:$0x1] %vm383, %v380
        %vm388 = vcmask 59394
        %389 = vst.msk [vmem:[%s382 - $0x1] sm:$0x4] %vm388, %v374
        %390 = vst.msk [vmem:[%s382 + $0x7] sm:$0x4] %vm388, %v376
        %391 = vst.msk [vmem:[%s382 + $0xf] sm:$0x4] %vm388, %v378
        %392 = vst.msk [vmem:[%s382 + $0x17] sm:$0x4] %vm388, %v380
        %vm393 = vcmask 61444
        %394 = vst.msk [vmem:[%s382 - $0x2] sm:$0x10] %vm393, %v374
        %395 = vst.msk [vmem:[%s382 + $0x6] sm:$0x10] %vm393, %v376
        %396 = vst.msk [vmem:[%s382 + $0xe] sm:$0x10] %vm393, %v378
        %397 = vst.msk [vmem:[%s382 + $0x16] sm:$0x10] %vm393, %v380
        %vm398 = vcmask 63494
        %399 = vst.msk [vmem:[%s382 - $0x3] sm:$0x40] %vm398, %v374
        %400 = vst.msk [vmem:[%s382 + $0x5] sm:$0x40] %vm398, %v376
        %401 = vst.msk [vmem:[%s382 + $0xd] sm:$0x40] %vm398, %v378
        %402 = vst.msk [vmem:[%s382 + $0x15] sm:$0x40] %vm398, %v380
        %403 = vst.msk [vmem:[%s382 + $0x4] sm:$0x1] %vm383, %v375
        %404 = vst.msk [vmem:[%s382 + $0xc] sm:$0x1] %vm383, %v377
        %405 = vst.msk [vmem:[%s382 + $0x14] sm:$0x1] %vm383, %v379
        %406 = vst.msk [vmem:[%s382 + $0x1c] sm:$0x1] %vm383, %v381
        %407 = vst.msk [vmem:[%s382 + $0x3] sm:$0x4] %vm388, %v375
        %408 = vst.msk [vmem:[%s382 + $0xb] sm:$0x4] %vm388, %v377
        %409 = vst.msk [vmem:[%s382 + $0x13] sm:$0x4] %vm388, %v379
        %410 = vst.msk [vmem:[%s382 + $0x1b] sm:$0x4] %vm388, %v381
        %411 = vst.msk [vmem:[%s382 + $0x2] sm:$0x10] %vm393, %v375
        %412 = vst.msk [vmem:[%s382 + $0xa] sm:$0x10] %vm393, %v377
        %413 = vst.msk [vmem:[%s382 + $0x12] sm:$0x10] %vm393, %v379
        %414 = vst.msk [vmem:[%s382 + $0x1a] sm:$0x10] %vm393, %v381
        %415 = vst.msk [vmem:[%s382 + $0x1] sm:$0x40] %vm398, %v375
        %416 = vst.msk [vmem:[%s382 + $0x9] sm:$0x40] %vm398, %v377
        %417 = vst.msk [vmem:[%s382 + $0x11] sm:$0x40] %vm398, %v379
        %418 = vst.msk [vmem:[%s382 + $0x19] sm:$0x40] %vm398, %v381
        %vm419 = vcmask 64512
        %420 = vst.msk [vmem:[%s134] sm:$0xff] %vm419, 0.0
        %421 = vst.msk [vmem:[%s134 + $0x8] sm:$0xff] %vm419, 0.0
        %s422 = scalar_lea.vmem %s134, 48 [#allocation5]
        %423 = vst.msk [vmem:[%s422] sm:$0xff] %vm419, 0.0
        %424 = vst.msk [vmem:[%s422 + $0x8] sm:$0xff] %vm419, 0.0
        %s425 = sand.u32 %s52, 1
        %s426 = scalar_lea.sflag [#allocation4], %s425
        %s427 = sand.u32 %s52, 1
        %s428 = smul.addr %s427, 64
        %s429 = scalar_lea.vmem [#allocation5], %s428
        // Predicated region
        $region29: #{tpu_custom_call.1} parent=23 // pred_check
          %p430 = pneg %p62
        $region30: #{tpu_custom_call.1} parent=23 // pred_check_branch
          %432 = sbr.rel (%p430) target = $region32
        $region31: #{tpu_custom_call.1} parent=23 // pred_region
          %s434 = ssub.s32 1024, 1024
          %435 = vsyncadd %s426, %s434
          %s436 = smul.addr %s18, 8
          %s437 = smul.addr %s436, 128
          %s438 = scalar_lea.hbm %s1, %s437
          %s439 = sshll.u32 %s429, 4
          %s440 = int_to_ptr.vmem [resolvable:$true] %s439
          %445 = dma.vmem_to_hbm [thread:$0]  %s440, 1024, %s438, %s426, 128, 128, 8
        $region32: #{tpu_custom_call.1} parent=23 // pred_fallthru
          _
      $region24: #{tpu_custom_call.1} parent=5 // pred_fallthru
        _
      %p446 = scmp.le.s32.totalorder 2, %s13
      // Predicated region
      $region33: #{tpu_custom_call.1} parent=5 // pred_check
        %p447 = pneg %p446
      $region34: #{tpu_custom_call.1} parent=5 // pred_check_branch
        %449 = sbr.rel (%p447) target = $region36
      $region35: #{tpu_custom_call.1} parent=5 // pred_region
        %s450 = ssub.s32 %s13, 2
        // Predicated region
        $region37: #{tpu_custom_call.1} parent=35 // pred_check
          %p451 = pneg %p68
        $region38: #{tpu_custom_call.1} parent=35 // pred_check_branch
          %453 = sbr.rel (%p451) target = $region40
        $region39: #{tpu_custom_call.1} parent=35 // pred_region
          %s454 = sand.u32 %s53, 1
          %s455 = scalar_lea.sflag [#allocation4], %s454
          %s456 = sand.u32 %s53, 1
          %s457 = smul.addr %s456, 64
          %s458 = scalar_lea.vmem [#allocation5], %s457
          %459 = dma.done %s455, 1024
        $region40: #{tpu_custom_call.1} parent=35 // pred_fallthru
          _
      $region36: #{tpu_custom_call.1} parent=5 // pred_fallthru
        _
    $region6: #{tpu_custom_call.1} parent=1 // loop_footer
      %s17 = sadd.s32 1, %s13
    $region7: #{tpu_custom_call.1} parent=1 // loop_footer_branch
      %12 = sbr.rel target = $region3
    $region8: #{tpu_custom_call.1} parent=1 // loop_exit
      _
    %460 = vsyncpa [#allocation3], 1
    %s461 = scalar_lea.sflag [#allocation3], 1
    %462 = vsyncpa %s461, 1
    %463 = vsyncpa [#allocation4], 1
    %s464 = scalar_lea.sflag [#allocation4], 1
    %465 = vsyncpa %s464, 1

</llo_original>
